<compile_context>
chip_gen: v7x
topology: tpu7x:2x2x1
jax: 0.10.0
libtpu: 0.0.40
codegen_flags: <defaults>
</compile_context>

<pallas_src>
import functools

import jax
import jax.numpy as jnp
from jax.experimental import pallas as pl
from jax.experimental.pallas import tpu as pltpu


def _rmsnorm_kernel(x_ref, w_ref, o_ref, *, eps):
    # x_ref: (tm, dim) tile; w_ref: (1, dim) weight (resident across grid steps).
    x = x_ref[...].astype(jnp.float32)                       # x.float()
    ms = jnp.mean(x * x, axis=-1, keepdims=True)             # mean of squares over last dim
    inv = jax.lax.rsqrt(ms + eps)
    normed = (x * inv).astype(x_ref.dtype)                   # .type_as(x)  (torch semantics)
    # normed (x.dtype) * weight (w.dtype) promotes exactly like torch's `output * self.weight`.
    o_ref[...] = (normed * w_ref[...]).astype(o_ref.dtype)


def _vmem_capacity_bytes():
    """Per-TensorCore VMEM capacity; fallback is safe for every generation (v7x = 64 MiB)."""
    try:
        return int(pltpu.get_tpu_info().vmem_capacity_bytes)
    except Exception:
        return 64 << 20


def _pick_tile_rows(rows, dim, in_itemsize, out_itemsize, vmem_bytes):
    """Row-tile size: VMEM-safe, ~1-4 MiB input tiles, long grid, sublane-pack aligned."""
    pack = max(8, 32 // max(1, in_itemsize))     # 8 (f32) / 16 (bf16,f16) / 32 (int8,fp8)
    if rows <= pack:
        return rows                               # block == full extent -> layout rule satisfied

    # Hard VMEM cap: double-buffered in/out tiles + f32 temp (no-op for f32 input) + normed temp.
    temp = (0 if in_itemsize >= 4 else 4) + in_itemsize
    per_row = dim * (2 * in_itemsize + 2 * out_itemsize + 4 + temp)
    vmem_cap = max(pack, int(0.5 * vmem_bytes) // per_row)

    in_row_bytes = max(1, dim * in_itemsize)
    max_rows_4mib = max(pack, (4 << 20) // in_row_bytes)   # tiles beyond a few MiB buy nothing
    min_rows_1mib = max(pack, (1 << 20) // in_row_bytes)   # don't over-split into tiny tiles

    upper = min(rows, vmem_cap, max_rows_4mib)
    lower_pref = min(upper, min_rows_1mib)
    steps_pref = -(-rows // 8)                    # ceil(rows / 8): aim for >= 8 grid steps
    tm = max(lower_pref, min(upper, steps_pref))

    # Round: bias to multiples of 128 when large, always a multiple of the sublane pack.
    if tm >= 256:
        tm = (tm // 128) * 128
    tm = max(pack, (tm // pack) * pack)
    return min(tm, rows)


def rmsnorm(x: jax.Array, weight: jax.Array, eps: float = 1e-6):
    """RMSNorm over the last axis. x: (..., dim), weight: (dim,)."""
    orig_shape = x.shape
    dim = orig_shape[-1]
    assert weight.shape == (dim,)
    # TODO(synk): if dim is not a multiple of 128 (or < 128) a lane-dense fold of rows into
    # lanes would avoid masked partial stores; typical hidden dims are already 128-aligned.

    x2d = x.reshape(-1, dim)
    rows = x2d.shape[0]
    out_dtype = jnp.promote_types(x.dtype, weight.dtype)   # matches torch promotion

    in_bytes = jnp.dtype(x.dtype).itemsize
    out_bytes = jnp.dtype(out_dtype).itemsize
    w_bytes = jnp.dtype(weight.dtype).itemsize
    vmem_bytes = _vmem_capacity_bytes()
    tm = _pick_tile_rows(rows, dim, in_bytes, out_bytes, vmem_bytes)

    # VMEM limit sized from the actual per-step footprint (+ margin), capped below capacity.
    temp = (0 if in_bytes >= 4 else 4) + in_bytes
    footprint = tm * dim * (2 * in_bytes + 2 * out_bytes + 4 + temp) + 2 * dim * w_bytes
    vmem_limit = int(max(16 << 20, min(footprint + (4 << 20), int(0.9 * vmem_bytes))))

    w2d = weight.reshape(1, dim)

    out = pl.pallas_call(
        functools.partial(_rmsnorm_kernel, eps=float(eps)),
        out_shape=jax.ShapeDtypeStruct((rows, dim), out_dtype),
        grid=(pl.cdiv(rows, tm),),   # ragged last block handled by Pallas (no pad/slice pass)
        in_specs=[
            pl.BlockSpec((tm, dim), lambda i: (i, 0)),   # x tile (streamed, double-buffered)
            pl.BlockSpec((1, dim), lambda i: (0, 0)),    # weight (constant block -> resident)
        ],
        out_specs=pl.BlockSpec((tm, dim), lambda i: (i, 0)),
        compiler_params=pltpu.CompilerParams(
            # "parallel" lets the runtime shard the (now long) row grid across TCs on v7x.
            dimension_semantics=("parallel",),
            vmem_limit_bytes=vmem_limit,
        ),
    )(x2d, w2d)

    return out.reshape(orig_shape[:-1] + (dim,))


def _reference_rmsnorm(x, weight, eps=1e-6):
    xf = x.astype(jnp.float32)
    ms = jnp.mean(xf * xf, axis=-1, keepdims=True)
    normed = (xf * jax.lax.rsqrt(ms + eps)).astype(x.dtype)   # .type_as(x)
    return normed * weight                                    # promotes like torch


if __name__ == "__main__":
    key = jax.random.PRNGKey(0)

    # Small shapes consistent with the module: dim is the normalized (hidden) axis.
    batch, seq, dim = 2, 8, 128
    x = jax.random.normal(key, (batch, seq, dim), dtype=jnp.float32)
    weight = jnp.ones((dim,), dtype=jnp.float32)  # nn.Parameter(torch.ones(dim))

    out = jax.block_until_ready(rmsnorm(x, weight, eps=1e-6))
    ref = _reference_rmsnorm(x, weight, eps=1e-6)
    assert out.shape == x.shape and out.dtype == x.dtype
    assert jnp.allclose(out, ref, atol=1e-5, rtol=1e-5)

    # Ragged case: rows (= 3*5 = 15) not a multiple of the tile -> exercises the
    # no-pad partial last-block path.
    x2 = jax.random.normal(jax.random.PRNGKey(1), (3, 5, dim), dtype=jnp.float32)
    w2 = 0.5 + jax.random.uniform(jax.random.PRNGKey(2), (dim,), dtype=jnp.float32)
    out2 = jax.block_until_ready(rmsnorm(x2, w2, eps=1e-6))
    ref2 = _reference_rmsnorm(x2, w2, eps=1e-6)
    assert jnp.allclose(out2, ref2, atol=1e-5, rtol=1e-5)

    # bf16 input with f32 weight: checks the torch-exact "round normed to x.dtype before
    # multiplying by weight" path (output promotes to f32, like torch bf16 * f32).
    x3 = jax.random.normal(jax.random.PRNGKey(3), (4, 16, dim), dtype=jnp.bfloat16)
    w3 = 0.5 + jax.random.uniform(jax.random.PRNGKey(4), (dim,), dtype=jnp.float32)
    out3 = jax.block_until_ready(rmsnorm(x3, w3, eps=1e-6))
    ref3 = _reference_rmsnorm(x3, w3, eps=1e-6)
    assert out3.dtype == jnp.promote_types(x3.dtype, w3.dtype)
    assert jnp.allclose(out3.astype(jnp.float32), ref3.astype(jnp.float32),
                        atol=2e-2, rtol=2e-2)

    print("KERNEL_OK")
</pallas_src>

<mosaic_0001>
module attributes {stable_mosaic.version = 11 : i64} {
  func.func @_rmsnorm_kernel(%arg0: i32, %arg1: memref<16x128xf32, #tpu.memory_space<vmem>>, %arg2: memref<1x128xf32, #tpu.memory_space<vmem>>, %arg3: memref<16x128xf32, #tpu.memory_space<vmem>>) attributes {dimension_semantics = [#tpu.dimension_semantics<parallel>], iteration_bounds = array<i64: 1>, scalar_prefetch = 0 : i64, scratch_operands = 0 : i64, tpu.core_type = #tpu.core_type<tc>, window_params = [{transform_indices = @transform_0, window_bounds = array<i64: 16, 128>}, {pipeline_mode = #tpu.pipeline_mode<synchronous>, transform_indices = @transform_1, window_bounds = array<i64: 1, 128>}, {transform_indices = @transform_2, window_bounds = array<i64: 16, 128>}]} {
    %c0 = arith.constant 0 : index
    %c0_0 = arith.constant 0 : index
    %0 = vector.load %arg1[%c0, %c0_0] : memref<16x128xf32, #tpu.memory_space<vmem>>, vector<16x128xf32>
    %1 = arith.mulf %0, %0 : vector<16x128xf32>
    %cst = arith.constant dense<0.000000e+00> : vector<16xf32>
    %2 = vector.multi_reduction <add>, %1, %cst [1] : vector<16x128xf32> to vector<16xf32>
    %3 = vector.shape_cast %2 : vector<16xf32> to vector<16x1xf32>
    %cst_1 = arith.constant 1.280000e+02 : f32
    %4 = vector.broadcast %cst_1 : f32 to vector<16x1xf32>
    %5 = arith.divf %3, %4 : vector<16x1xf32>
    %cst_2 = arith.constant 9.99999997E-7 : f32
    %6 = vector.broadcast %cst_2 : f32 to vector<16x1xf32>
    %7 = arith.addf %5, %6 : vector<16x1xf32>
    %8 = math.rsqrt %7 : vector<16x1xf32>
    %9 = vector.broadcast %8 : vector<16x1xf32> to vector<16x128xf32>
    %10 = arith.mulf %0, %9 : vector<16x128xf32>
    %c0_3 = arith.constant 0 : index
    %c0_4 = arith.constant 0 : index
    %11 = vector.load %arg2[%c0_3, %c0_4] : memref<1x128xf32, #tpu.memory_space<vmem>>, vector<1x128xf32>
    %12 = vector.broadcast %11 : vector<1x128xf32> to vector<16x128xf32>
    %13 = arith.mulf %10, %12 : vector<16x128xf32>
    %c0_5 = arith.constant 0 : index
    %c0_6 = arith.constant 0 : index
    %14 = vector.load %arg3[%c0_5, %c0_6] : memref<16x128xf32, #tpu.memory_space<vmem>>, vector<16x128xf32>
    tpu.vector_store %arg3[%c0_5, %c0_6], %13 {strides = array<i32>} : memref<16x128xf32, #tpu.memory_space<vmem>>, vector<16x128xf32>,
    return
  }
  func.func @transform_0(%arg0: i32) -> (i32, i32) {
    %c0_i32 = arith.constant 0 : i32
    %c0_i32_0 = arith.constant 0 : i32
    return %arg0, %c0_i32 : i32, i32
  }
  func.func @transform_1(%arg0: i32) -> (i32, i32) {
    %c0_i32 = arith.constant 0 : i32
    %c0_i32_0 = arith.constant 0 : i32
    %c0_i32_1 = arith.constant 0 : i32
    return %c0_i32, %c0_i32_0 : i32, i32
  }
  func.func @transform_2(%arg0: i32) -> (i32, i32) {
    %c0_i32 = arith.constant 0 : i32
    %c0_i32_0 = arith.constant 0 : i32
    return %arg0, %c0_i32 : i32, i32
  }
}

</mosaic_0001>

<llo_original>
// kernel: tpu_custom_call.1
$region0: #{tpu_custom_call.1}
  #allocation0 [shape = 'u32[]', space=smem, size = 0x4, offset = 0x4, fixed_abs, tag = 'smem constant byte address 0x4 - core index']
  #allocation1 [shape = 'u32[144,128]{1,0:T(1,128)}', space=vmem, size = 0x12000, scoped, tag = 'internal scratch']
  %s0 = inlined_call_operand.hbm [shape: f32[16,128], index: 0, kind: input, shape index: {}]
  %s1 = inlined_call_operand.vmem [shape: f32[1,128], index: 1, kind: input, shape index: {}]
  %s2 = inlined_call_operand.hbm [shape: f32[16,128], index: 2, kind: output, shape index: {}]
  %s3 = sld [smem:[#allocation0]]
  $region22: #{tpu_custom_call.1} parent=0
    _
  %s5 = ssub.s32 1, %s3
  %s6 = scalar_select 0, %s5, %s3
  $region1: #{tpu_custom_call.1} parent=0
    #allocation2 [shape = 'u8[8192]{0}', space=vmem, size = 0x2000, scoped, tag = 'input window, operand 0, single buffered']
    #allocation3 [shape = 's32[1]{0}', space=sflag, size = 0x4, scoped, tag = 'scoped memory for tpu_custom_call.1']
    #allocation4 [shape = 's32[1]{0}', space=sflag, size = 0x4, scoped, tag = 'scoped memory for tpu_custom_call.1']
    #allocation5 [shape = 'u8[8192]{0}', space=vmem, size = 0x2000, scoped, tag = 'output window, operand 0, single buffered']
    %7 = vsyncpa [#allocation3], 0
    %8 = vsyncpa [#allocation4], 0
    // Predicated region
    $region2: #{tpu_custom_call.1} parent=1 // pred_check
      _
    $region3: #{tpu_custom_call.1} parent=1 // pred_check_branch
      %10 = sbr.rel (0) target = $region5
    $region4: #{tpu_custom_call.1} parent=1 // pred_region
      %s12 = ssub.s32 256, 256
      %13 = vsyncadd [#allocation3], %s12
      %s14 = sshll.u32 [#allocation2], 4
      %s15 = int_to_ptr.vmem [resolvable:$true] %s14
      %20 = dma.hbm_to_vmem [thread:$0]  %s0, 256, %s15, [#allocation3], 128, 128, 8
    $region5: #{tpu_custom_call.1} parent=1 // pred_fallthru
      _
    // Predicated region
    $region6: #{tpu_custom_call.1} parent=1 // pred_check
      _
    $region7: #{tpu_custom_call.1} parent=1 // pred_check_branch
      %22 = sbr.rel (0) target = $region9
    $region8: #{tpu_custom_call.1} parent=1 // pred_region
      _
    $region9: #{tpu_custom_call.1} parent=1 // pred_fallthru
      _
    // Predicated region
    $region10: #{tpu_custom_call.1} parent=1 // pred_check
      _
    $region11: #{tpu_custom_call.1} parent=1 // pred_check_branch
      %24 = sbr.rel (0) target = $region13
    $region12: #{tpu_custom_call.1} parent=1 // pred_region
      %25 = dma.done [#allocation3], 256
    $region13: #{tpu_custom_call.1} parent=1 // pred_fallthru
      _
    %v26 = vld [vmem:[#allocation2] sm:$0xff]
    %v27 = vld [vmem:[#allocation2 + $0x8] sm:$0xff]
    %v28 = vmul.f32 %v26, %v26
    %v29 = vmul.f32 %v27, %v27
    %30 = vadd.xlane.f32.xlu0 %v28
    %v31 = vpop.xlane.xlu0 %30
    %32 = vadd.xlane.f32.xlu0 %v29
    %v33 = vpop.xlane.xlu0 %32
    %v34 = vrcp.pop 128.0
    %v35 = vmul.f32 %v31, %v34
    %v36 = vmul.f32 %v33, %v34
    %v37 = vadd.f32 %v35, 1e-06
    %v38 = vadd.f32 %v36, 1e-06
    %v39 = vrsqrt.pop %v37
    %v40 = vrsqrt.pop %v38
    %v41 = vmul.f32 %v26, %v39
    %v42 = vmul.f32 %v27, %v40
    %v43 = vld [vmem:[%s1] sm:$0x1]
    %v45 = vlaneseq
    %v46 = vshrl.u32 %v45, 7
    %v47 = vsub.s32 0, %v46
    %v48 = vrot.slane %v43, %v47
    %v50 = vmul.f32 %v41, %v48
    %v51 = vmul.f32 %v42, %v48
    %52 = vst [vmem:[#allocation5] sm:$0xff] %v50
    %53 = vst [vmem:[#allocation5 + $0x8] sm:$0xff] %v51
    // Predicated region
    $region14: #{tpu_custom_call.1} parent=1 // pred_check
      _
    $region15: #{tpu_custom_call.1} parent=1 // pred_check_branch
      %55 = sbr.rel (0) target = $region17
    $region16: #{tpu_custom_call.1} parent=1 // pred_region
      %s57 = ssub.s32 256, 256
      %58 = vsyncadd [#allocation4], %s57
      %s59 = sshll.u32 [#allocation5], 4
      %s60 = int_to_ptr.vmem [resolvable:$true] %s59
      %65 = dma.vmem_to_hbm [thread:$0]  %s60, 256, %s2, [#allocation4], 128, 128, 8
    $region17: #{tpu_custom_call.1} parent=1 // pred_fallthru
      _
    // Predicated region
    $region18: #{tpu_custom_call.1} parent=1 // pred_check
      _
    $region19: #{tpu_custom_call.1} parent=1 // pred_check_branch
      %67 = sbr.rel (0) target = $region21
    $region20: #{tpu_custom_call.1} parent=1 // pred_region
      %68 = dma.done [#allocation4], 256
    $region21: #{tpu_custom_call.1} parent=1 // pred_fallthru
      _
    %69 = vsyncpa [#allocation3], 1
    %70 = vsyncpa [#allocation4], 1

</llo_original>
